<compile_context>
chip_gen: v7x
topology: tpu7x:2x2x1
jax: 0.10.0
libtpu: 0.0.40
codegen_flags: <defaults>
</compile_context>

<pallas_src>
import math

import numpy as np
import jax
import jax.numpy as jnp
from jax import lax
from jax.experimental import pallas as pl
from jax.experimental.pallas import tpu as pltpu


def _lcm(a, b):
    return a * b // math.gcd(a, b)


def _default_tile_rows():
    """Per-generation default row-tile: keep v5e small, go big on v6e/v7x."""
    try:
        kind = jax.devices()[0].device_kind.lower()
    except Exception:
        return 4096
    if "v5 lite" in kind or "v5lite" in kind or "v5e" in kind:
        return 4096
    return 8192


def _make_anls_kernel(r, tile_rows, align, chunk):
    """Kernel over one (tile_rows, 128) lane-dense tile of inputs/targets.

    Accumulates the un-weighted deviance (t-b)^2 / ((r+b)^2 (t+r)) per
    (row mod align, lane) with a fori_loop over `chunk`-row slabs (keeps
    elementwise temporaries slab-sized), applies the (align,128) weight tile
    once, and writes an (8,128) partial sum (full unmasked vreg store).
    """
    r = float(r)
    n_chunks = tile_rows // chunk
    slabs = chunk // align

    def kernel(b_ref, t_ref, w_ref, o_ref):
        def body(i, acc):
            row0 = pl.multiple_of(i * chunk, 8)
            b = b_ref[pl.ds(row0, chunk), :]          # (chunk, 128) f32
            t = t_ref[pl.ds(row0, chunk), :]
            diff = t - b
            rb = r + b
            denom = (rb * rb) * (t + r)
            dev = (diff * diff) / denom               # un-weighted deviance / r^2
            return acc + jnp.sum(dev.reshape(slabs, align, 128), axis=0)

        acc = lax.fori_loop(0, n_chunks, body,
                            jnp.zeros((align, 128), jnp.float32))
        weighted = acc * w_ref[...]                   # (2l+1) * r^2 / N folded in once
        o_ref[...] = jnp.sum(weighted.reshape(align // 8, 8, 128), axis=0)

    return kernel


def anls_loss_pallas(inputs, targets, obs_std_err, l_obs, *,
                     tile_rows=None, force_pallas=False):
    """JAX/Pallas equivalent of AnlsLoss.forward (returns a scalar f32 loss)."""
    b = jnp.asarray(inputs, dtype=jnp.float32)
    t = jnp.asarray(targets, dtype=jnp.float32)
    assert b.shape == t.shape and b.ndim == 2
    n_batch, n_feat = b.shape
    L = l_obs + 1
    assert L <= n_feat, "need at least l_obs+1 feature columns"

    ells = 2.0 * np.arange(L, dtype=np.float64) + 1.0
    r = float(obs_std_err) ** 2 * 4.0 * np.pi / float(np.sum(ells))

    # Per-feature weights with all constants folded in; zero weight for
    # l > l_obs replaces the column slice of the reference implementation.
    w_feat = np.zeros((n_feat,), dtype=np.float64)
    w_feat[:L] = ells * (r * r) / float(n_batch)
    w_l = jnp.asarray(w_feat[:L], dtype=jnp.float32)

    def _wsum(bb, tt):
        # Fused pure-JAX weighted deviance sum over a (M, L) slab.
        dev = (tt - bb) ** 2 / ((r + bb) ** 2 * (tt + r))
        return jnp.sum(dev * w_l)

    total = n_batch * n_feat
    period = _lcm(n_feat, 128) // 128          # weight pattern period in 128-lane rows
    align = _lcm(8, period)                    # sublane-aligned pattern period

    # Small-problem / degenerate bypass: launch + plumbing would dominate
    # (also covers r == 0, where the padded/folded formulation would NaN).
    if (not force_pallas and total < (1 << 18)) or r == 0.0 or align > 4096:
        return _wsum(b[:, :L], t[:, :L])

    padded_total = ((total + 127) // 128) * 128
    rows_p = padded_total // 128
    if rows_p < align:
        return _wsum(b[:, :L], t[:, :L])

    # Inner-loop chunk (~64 rows, multiple of `align`) and row tile (multiple
    # of `chunk`, capped at the available rows).
    chunk = align * max(1, 64 // align)
    if chunk > rows_p:
        chunk = (rows_p // align) * align
    if tile_rows is None:
        tile_rows = _default_tile_rows()
    tr = max(chunk, (min(int(tile_rows), rows_p) // chunk) * chunk)
    n_tiles = rows_p // tr
    main = n_tiles * tr * 128                  # flat elements covered by the kernel
    assert main % n_feat == 0                  # tr*128 is a multiple of lcm(n_feat,128)

    # Lane-dense flatten.  When total % 128 == 0 this is a zero-copy bitcast
    # reshape; otherwise a single minimal pad (<128 zeros) is appended.
    flat_b = b.reshape(-1)
    flat_t = t.reshape(-1)
    if padded_total != total:
        pad = padded_total - total
        flat_b = jnp.pad(flat_b, (0, pad))
        flat_t = jnp.pad(flat_t, (0, pad))
    b2 = flat_b.reshape(rows_p, 128)
    t2 = flat_t.reshape(rows_p, 128)

    # Small weight tile, independent of tile_rows: w_pat[j, lane] = w_feat[(j*128+lane) % F].
    w_pat = jnp.asarray(
        w_feat[np.arange(align * 128) % n_feat].reshape(align, 128),
        dtype=jnp.float32)

    block_bytes = tr * 128 * 4
    vmem_needed = (4 * block_bytes            # 2 inputs x 2 pipeline buffers
                   + 4 * align * 128 * 4      # weight tile (+ slack)
                   + 6 * chunk * 128 * 4      # in-kernel slab temporaries
                   + (1 << 20))
    vmem_limit = int(min(max(2 * vmem_needed, 24 << 20), 100 << 20))

    partials = pl.pallas_call(
        _make_anls_kernel(r, tr, align, chunk),
        out_shape=jax.ShapeDtypeStruct((n_tiles * 8, 128), jnp.float32),
        grid_spec=pltpu.PrefetchScalarGridSpec(
            num_scalar_prefetch=0,
            grid=(n_tiles,),
            in_specs=[
                pl.BlockSpec((tr, 128), lambda i: (i, 0)),        # inputs tile
                pl.BlockSpec((tr, 128), lambda i: (i, 0)),        # targets tile
                pl.BlockSpec((align, 128), lambda i: (0, 0)),     # weight tile (constant block)
            ],
            out_specs=pl.BlockSpec((8, 128), lambda i: (i, 0)),   # (8,128) partial per step
        ),
        compiler_params=pltpu.CompilerParams(
            dimension_semantics=("parallel",),                    # megacore on v7x
            vmem_limit_bytes=vmem_limit,
        ),
        cost_estimate=pl.CostEstimate(
            flops=10 * main,
            transcendentals=main,
            bytes_accessed=8 * main + n_tiles * 8 * 128 * 4 + align * 128 * 4),
    )(b2, t2, w_pat)

    loss = jnp.sum(partials)

    # Ragged tail (< one tile); always starts on a sample boundary since
    # tr*128 is a multiple of n_feat.  Computed from small slices of the
    # original 2-D arrays (no large copies).
    if main < total:
        s0 = main // n_feat
        loss = loss + _wsum(b[s0:, :L], t[s0:, :L])

    return loss


def anls_loss_ref(inputs, targets, obs_std_err, l_obs):
    """Pure-JAX reference mirroring the PyTorch module (f32)."""
    L = l_obs + 1
    ells = 2.0 * np.arange(L) + 1.0
    r = float(obs_std_err) ** 2 * 4.0 * np.pi / float(np.sum(ells))
    bb = jnp.asarray(inputs, dtype=jnp.float32)[:, :L]
    tt = jnp.asarray(targets, dtype=jnp.float32)[:, :L]
    w = jnp.asarray(ells, dtype=jnp.float32)
    dev = r ** 2 * (tt - bb) ** 2 / ((r + bb) ** 2 * (tt + r))
    return (dev @ w).mean()


if __name__ == "__main__":
    key = jax.random.PRNGKey(0)
    k = jax.random.split(key, 6)

    # --- test 1: nice shapes (N*F % 128 == 0): zero-copy path, 4-step grid ---
    n1, f1, lobs1, err1 = 2048, 16, 7, 0.1
    a1 = jax.random.uniform(k[0], (n1, f1), minval=0.1, maxval=1.0)
    b1 = jax.random.uniform(k[1], (n1, f1), minval=0.1, maxval=1.0)
    out1 = jax.block_until_ready(
        anls_loss_pallas(a1, b1, err1, lobs1, tile_rows=64, force_pallas=True))
    ref1 = anls_loss_ref(a1, b1, err1, lobs1)
    np.testing.assert_allclose(np.asarray(out1), np.asarray(ref1), rtol=2e-4, atol=1e-9)

    # --- test 2: awkward shapes (N*F % 128 != 0, F=24 -> align=24): minimal
    #             pad, multi-step grid, wrapper-side ragged tail -------------
    n2, f2, lobs2, err2 = 1003, 24, 9, 0.05
    a2 = jax.random.uniform(k[2], (n2, f2), minval=0.1, maxval=1.0)
    b2 = jax.random.uniform(k[3], (n2, f2), minval=0.1, maxval=1.0)
    out2 = jax.block_until_ready(
        anls_loss_pallas(a2, b2, err2, lobs2, tile_rows=48, force_pallas=True))
    ref2 = anls_loss_ref(a2, b2, err2, lobs2)
    np.testing.assert_allclose(np.asarray(out2), np.asarray(ref2), rtol=2e-4, atol=1e-9)

    # --- test 3: default tile_rows / vmem-limit path --------------------------
    n3, f3, lobs3, err3 = 4096, 16, 5, 0.2
    a3 = jax.random.uniform(k[4], (n3, f3), minval=0.1, maxval=1.0)
    b3 = jax.random.uniform(k[5], (n3, f3), minval=0.1, maxval=1.0)
    out3 = jax.block_until_ready(
        anls_loss_pallas(a3, b3, err3, lobs3, force_pallas=True))
    ref3 = anls_loss_ref(a3, b3, err3, lobs3)
    np.testing.assert_allclose(np.asarray(out3), np.asarray(ref3), rtol=2e-4, atol=1e-9)

    print("KERNEL_OK")
</pallas_src>

<mosaic_0001>
module attributes {stable_mosaic.version = 11 : i64} {
  func.func @kernel(%arg0: i32, %arg1: memref<64x128xf32, #tpu.memory_space<vmem>>, %arg2: memref<64x128xf32, #tpu.memory_space<vmem>>, %arg3: memref<8x128xf32, #tpu.memory_space<vmem>>, %arg4: memref<8x128xf32, #tpu.memory_space<vmem>>) attributes {dimension_semantics = [#tpu.dimension_semantics<parallel>], iteration_bounds = array<i64: 4>, scalar_prefetch = 0 : i64, scratch_operands = 0 : i64, tpu.core_type = #tpu.core_type<tc>, window_params = [{transform_indices = @transform_0, window_bounds = array<i64: 64, 128>}, {transform_indices = @transform_1, window_bounds = array<i64: 64, 128>}, {pipeline_mode = #tpu.pipeline_mode<synchronous>, transform_indices = @transform_2, window_bounds = array<i64: 8, 128>}, {transform_indices = @transform_3, window_bounds = array<i64: 8, 128>}]} {
    %cst = arith.constant 0.000000e+00 : f32
    %0 = vector.broadcast %cst : f32 to vector<8x128xf32>
    %c0_i32 = arith.constant 0 : i32
    %c64_i32 = arith.constant 64 : i32
    %1 = arith.muli %c0_i32, %c64_i32 : i32
    %2 = tpu.assume_multiple %1, 8 : i32
    %3 = arith.index_cast %2 : i32 to index
    %c0 = arith.constant 0 : index
    %4 = vector.load %arg1[%3, %c0] : memref<64x128xf32, #tpu.memory_space<vmem>>, vector<64x128xf32>
    %5 = arith.index_cast %2 : i32 to index
    %c0_0 = arith.constant 0 : index
    %6 = vector.load %arg2[%5, %c0_0] : memref<64x128xf32, #tpu.memory_space<vmem>>, vector<64x128xf32>
    %7 = arith.subf %6, %4 : vector<64x128xf32>
    %cst_1 = arith.constant 0.00196349551 : f32
    %8 = vector.broadcast %cst_1 : f32 to vector<64x128xf32>
    %9 = arith.addf %8, %4 : vector<64x128xf32>
    %10 = arith.mulf %9, %9 : vector<64x128xf32>
    %cst_2 = arith.constant 0.00196349551 : f32
    %11 = vector.broadcast %cst_2 : f32 to vector<64x128xf32>
    %12 = arith.addf %6, %11 : vector<64x128xf32>
    %13 = arith.mulf %10, %12 : vector<64x128xf32>
    %14 = arith.mulf %7, %7 : vector<64x128xf32>
    %15 = arith.divf %14, %13 : vector<64x128xf32>
    %16 = vector.shape_cast %15 : vector<64x128xf32> to vector<8x8x128xf32>
    %cst_3 = arith.constant dense<0.000000e+00> : vector<8x128xf32>
    %17 = vector.multi_reduction <add>, %16, %cst_3 [0] : vector<8x8x128xf32> to vector<8x128xf32>
    %18 = arith.addf %0, %17 : vector<8x128xf32>
    %c1_i32 = arith.constant 1 : i32
    %c0_4 = arith.constant 0 : index
    %c0_5 = arith.constant 0 : index
    %19 = vector.load %arg3[%c0_4, %c0_5] : memref<8x128xf32, #tpu.memory_space<vmem>>, vector<8x128xf32>
    %20 = arith.mulf %18, %19 : vector<8x128xf32>
    %21 = vector.shape_cast %20 : vector<8x128xf32> to vector<1x8x128xf32>
    %cst_6 = arith.constant dense<0.000000e+00> : vector<8x128xf32>
    %22 = vector.multi_reduction <add>, %21, %cst_6 [0] : vector<1x8x128xf32> to vector<8x128xf32>
    %c0_7 = arith.constant 0 : index
    %c0_8 = arith.constant 0 : index
    %23 = vector.load %arg4[%c0_7, %c0_8] : memref<8x128xf32, #tpu.memory_space<vmem>>, vector<8x128xf32>
    tpu.vector_store %arg4[%c0_7, %c0_8], %22 {strides = array<i32>} : memref<8x128xf32, #tpu.memory_space<vmem>>, vector<8x128xf32>,
    return
  }
  func.func @transform_0(%arg0: i32) -> (i32, i32) {
    %c0_i32 = arith.constant 0 : i32
    %c0_i32_0 = arith.constant 0 : i32
    return %arg0, %c0_i32 : i32, i32
  }
  func.func @transform_1(%arg0: i32) -> (i32, i32) {
    %c0_i32 = arith.constant 0 : i32
    %c0_i32_0 = arith.constant 0 : i32
    return %arg0, %c0_i32 : i32, i32
  }
  func.func @transform_2(%arg0: i32) -> (i32, i32) {
    %c0_i32 = arith.constant 0 : i32
    %c0_i32_0 = arith.constant 0 : i32
    %c0_i32_1 = arith.constant 0 : i32
    return %c0_i32, %c0_i32_0 : i32, i32
  }
  func.func @transform_3(%arg0: i32) -> (i32, i32) {
    %c0_i32 = arith.constant 0 : i32
    %c0_i32_0 = arith.constant 0 : i32
    return %arg0, %c0_i32 : i32, i32
  }
}

</mosaic_0001>

<llo_original>
// kernel: tpu_custom_call.1
$region0: #{tpu_custom_call.1}
  #allocation0 [shape = 'u32[]', space=smem, size = 0x4, offset = 0x4, fixed_abs, tag = 'smem constant byte address 0x4 - core index']
  #allocation1 [shape = 'u32[144,128]{1,0:T(1,128)}', space=vmem, size = 0x12000, scoped, tag = 'internal scratch']
  %s0 = inlined_call_operand.hbm [shape: f32[256,128], index: 0, kind: input, shape index: {}]
  %s1 = inlined_call_operand.hbm [shape: f32[256,128], index: 1, kind: input, shape index: {}]
  %s2 = inlined_call_operand.hbm [shape: f32[8,128], index: 2, kind: input, shape index: {}]
  %s3 = inlined_call_operand.hbm [shape: f32[32,128], index: 3, kind: output, shape index: {}]
  %s4 = sld [smem:[#allocation0]]
  $region57: #{tpu_custom_call.1} parent=0
    _
  %s6 = ssub.s32 1, %s4
  %s7 = scalar_select 0, %s6, %s4
  $region1: #{tpu_custom_call.1} parent=0
    #allocation2 [shape = 'u8[65536]{0}', space=vmem, size = 0x10000, scoped, tag = 'input window, operand 0']
    #allocation3 [shape = 's32[2]{0}', space=sflag, size = 0x8, scoped, tag = 'scoped memory for tpu_custom_call.1']
    #allocation4 [shape = 's32[2]{0}', space=sflag, size = 0x8, scoped, tag = 'scoped memory for tpu_custom_call.1']
    #allocation5 [shape = 'u8[65536]{0}', space=vmem, size = 0x10000, scoped, tag = 'input window, operand 1']
    #allocation6 [shape = 's32[2]{0}', space=sflag, size = 0x8, scoped, tag = 'scoped memory for tpu_custom_call.1']
    #allocation7 [shape = 'u8[4096]{0}', space=vmem, size = 0x1000, scoped, tag = 'input window, operand 2, single buffered']
    #allocation8 [shape = 'u8[8192]{0}', space=vmem, size = 0x2000, scoped, tag = 'output window, operand 0']
    %8 = vsyncpa [#allocation3], 0
    %s9 = scalar_lea.sflag [#allocation3], 1
    %10 = vsyncpa %s9, 0
    %11 = vsyncpa [#allocation6], 0
    %s12 = scalar_lea.sflag [#allocation6], 1
    %13 = vsyncpa %s12, 0
    %14 = vsyncpa [#allocation4], 0
    %s15 = scalar_lea.sflag [#allocation4], 1
    %16 = vsyncpa %s15, 0
    loop: start=0, step=1, limit=6
    $region2: #{tpu_custom_call.1} parent=1 // loop_pre_header
      _
    $region3: #{tpu_custom_call.1} parent=1 // loop_header
      %s18 = sphi 0, %s22
      %p19 = scmp.ge.s32.totalorder %s18, 6
      %s28 = sphi 0, %s30
      %s31 = sphi 0, %s28
      %s32 = sphi 0, %s31
      %s48 = sphi 0, %s32
      %s54 = sphi 0, %s56
      %s57 = sphi 0, %s54
      %s58 = sphi 0, %s57
      %s74 = sphi 0, %s58
      %s78 = sphi 0, %s78
      %s80 = sphi 0, %s78
      %s81 = sphi 0, %s80
      %s95 = sphi 0, %s81
      %s101 = sphi 0, %s103
      %s104 = sphi 0, %s101
      %s105 = sphi 0, %s104
      %s121 = sphi 0, %s105
    $region4: #{tpu_custom_call.1} parent=1 // loop_header_branch
      %21 = sbr.rel (%p19) target = $region8
    $region5: #{tpu_custom_call.1} parent=1 // loop_body
      %s23 = ssub.s32 %s18, 1
      %s24 = ssub.s32 %s18, 2
      %s25 = sadd.s32 %s18, 1
      %s26 = ssub.s32 %s18, %s25
      %p27 = scmp.eq.s32.totalorder %s26, 0
      %s29 = sadd.s32 %s28, 1
      %s30 = scalar_select %p27, %s28, %s29
      %p33 = pneg %p27
      %p34 = scmp.eq.s32.totalorder %s18, 3
      %p35 = por %p33, %p34
      %p36 = scmp.ne.s32.totalorder %s28, %s31
      %p37 = scmp.eq.s32.totalorder %s18, 0
      %p38 = por %p36, %p37
      %p39 = scmp.ne.s32.totalorder %s28, %s31
      %p40 = scmp.eq.s32.totalorder %s23, 3
      %p41 = por %p39, %p40
      %p42 = scmp.ne.s32.totalorder %s31, %s32
      %p43 = scmp.eq.s32.totalorder %s23, 0
      %p44 = por %p42, %p43
      %p45 = scmp.ne.s32.totalorder %s31, %s32
      %p46 = scmp.eq.s32.totalorder %s24, 3
      %p47 = por %p45, %p46
      %p49 = scmp.ne.s32.totalorder %s32, %s48
      %p50 = scmp.eq.s32.totalorder %s24, 0
      %p51 = por %p49, %p50
      %s52 = ssub.s32 %s18, %s25
      %p53 = scmp.eq.s32.totalorder %s52, 0
      %s55 = sadd.s32 %s54, 1
      %s56 = scalar_select %p53, %s54, %s55
      %p59 = pneg %p53
      %p60 = scmp.eq.s32.totalorder %s18, 3
      %p61 = por %p59, %p60
      %p62 = scmp.ne.s32.totalorder %s54, %s57
      %p63 = scmp.eq.s32.totalorder %s18, 0
      %p64 = por %p62, %p63
      %p65 = scmp.ne.s32.totalorder %s54, %s57
      %p66 = scmp.eq.s32.totalorder %s23, 3
      %p67 = por %p65, %p66
      %p68 = scmp.ne.s32.totalorder %s57, %s58
      %p69 = scmp.eq.s32.totalorder %s23, 0
      %p70 = por %p68, %p69
      %p71 = scmp.ne.s32.totalorder %s57, %s58
      %p72 = scmp.eq.s32.totalorder %s24, 3
      %p73 = por %p71, %p72
      %p75 = scmp.ne.s32.totalorder %s58, %s74
      %p76 = scmp.eq.s32.totalorder %s24, 0
      %p77 = por %p75, %p76
      %s79 = sadd.s32 %s78, 1
      %p82 = scmp.eq.s32.totalorder %s18, 3
      %p83 = scmp.ne.s32.totalorder %s78, %s80
      %p84 = scmp.eq.s32.totalorder %s18, 0
      %p85 = por %p83, %p84
      %p86 = scmp.ne.s32.totalorder %s78, %s80
      %p87 = scmp.eq.s32.totalorder %s23, 3
      %p88 = por %p86, %p87
      %p89 = scmp.ne.s32.totalorder %s80, %s81
      %p90 = scmp.eq.s32.totalorder %s23, 0
      %p91 = por %p89, %p90
      %p92 = scmp.ne.s32.totalorder %s80, %s81
      %p93 = scmp.eq.s32.totalorder %s24, 3
      %p94 = por %p92, %p93
      %p96 = scmp.ne.s32.totalorder %s81, %s95
      %p97 = scmp.eq.s32.totalorder %s24, 0
      %p98 = por %p96, %p97
      %s99 = ssub.s32 %s18, %s25
      %p100 = scmp.eq.s32.totalorder %s99, 0
      %s102 = sadd.s32 %s101, 1
      %s103 = scalar_select %p100, %s101, %s102
      %p106 = pneg %p100
      %p107 = scmp.eq.s32.totalorder %s18, 3
      %p108 = por %p106, %p107
      %p109 = scmp.ne.s32.totalorder %s101, %s104
      %p110 = scmp.eq.s32.totalorder %s18, 0
      %p111 = por %p109, %p110
      %p112 = scmp.ne.s32.totalorder %s101, %s104
      %p113 = scmp.eq.s32.totalorder %s23, 3
      %p114 = por %p112, %p113
      %p115 = scmp.ne.s32.totalorder %s104, %s105
      %p116 = scmp.eq.s32.totalorder %s23, 0
      %p117 = por %p115, %p116
      %p118 = scmp.ne.s32.totalorder %s104, %s105
      %p119 = scmp.eq.s32.totalorder %s24, 3
      %p120 = por %p118, %p119
      %p122 = scmp.ne.s32.totalorder %s105, %s121
      %p123 = scmp.eq.s32.totalorder %s24, 0
      %p124 = por %p122, %p123
      %p125 = scmp.le.s32.totalorder 1, %s18
      %p126 = scmp.lt.s32.totalorder %s18, 5
      %p127 = pnand %p125, %p126
      %p128 = pneg %p127
      // Predicated region
      $region9: #{tpu_custom_call.1} parent=5 // pred_check
        _
      $region10: #{tpu_custom_call.1} parent=5 // pred_check_branch
        %130 = sbr.rel (%p127) target = $region12
      $region11: #{tpu_custom_call.1} parent=5 // pred_region
        %s131 = ssub.s32 %s18, 1
        // Predicated region
        $region13: #{tpu_custom_call.1} parent=11 // pred_check
          %p132 = pneg %p91
        $region14: #{tpu_custom_call.1} parent=11 // pred_check_branch
          %134 = sbr.rel (%p132) target = $region16
        $region15: #{tpu_custom_call.1} parent=11 // pred_region
          %s136 = ssub.s32 128, 128
          %137 = vsyncadd [#allocation6], %s136
          %s139 = sshll.u32 [#allocation7], 4
          %s140 = int_to_ptr.vmem [resolvable:$true] %s139
          %142 = dma.hbm_to_vmem [thread:$0]  %s2, 128, %s140, [#allocation6]
        $region16: #{tpu_custom_call.1} parent=11 // pred_fallthru
          _
      $region12: #{tpu_custom_call.1} parent=5 // pred_fallthru
        _
      %p143 = scmp.lt.s32.totalorder %s18, 4
      // Predicated region
      $region17: #{tpu_custom_call.1} parent=5 // pred_check
        %p144 = pneg %p143
      $region18: #{tpu_custom_call.1} parent=5 // pred_check_branch
        %146 = sbr.rel (%p144) target = $region20
      $region19: #{tpu_custom_call.1} parent=5 // pred_region
        // Predicated region
        $region21: #{tpu_custom_call.1} parent=19 // pred_check
          %p147 = pneg %p38
        $region22: #{tpu_custom_call.1} parent=19 // pred_check_branch
          %149 = sbr.rel (%p147) target = $region24
        $region23: #{tpu_custom_call.1} parent=19 // pred_region
          %s150 = sand.u32 %s28, 1
          %s151 = scalar_lea.sflag [#allocation3], %s150
          %s152 = sand.u32 %s28, 1
          %s153 = smul.addr %s152, 64
          %s154 = scalar_lea.vmem [#allocation2], %s153
          %s155 = smul.u32 8, %s18
          %s157 = ssub.s32 1024, 1024
          %158 = vsyncadd %s151, %s157
          %s159 = smul.addr %s155, 128
          %s160 = scalar_lea.hbm %s0, %s159
          %s161 = sshll.u32 %s154, 4
          %s162 = int_to_ptr.vmem [resolvable:$true] %s161
          %167 = dma.hbm_to_vmem [thread:$0]  %s160, 1024, %s162, %s151, 128, 128, 8
        $region24: #{tpu_custom_call.1} parent=19 // pred_fallthru
          _
        // Predicated region
        $region25: #{tpu_custom_call.1} parent=19 // pred_check
          %p168 = pneg %p64
        $region26: #{tpu_custom_call.1} parent=19 // pred_check_branch
          %170 = sbr.rel (%p168) target = $region28
        $region27: #{tpu_custom_call.1} parent=19 // pred_region
          %s171 = sand.u32 %s18, 1
          %s172 = scalar_lea.sflag [#allocation6], %s171
          %s173 = sand.u32 %s54, 1
          %s174 = smul.addr %s173, 64
          %s175 = scalar_lea.vmem [#allocation5], %s174
          %s176 = smul.u32 8, %s18
          %s178 = ssub.s32 1024, 1024
          %179 = vsyncadd %s172, %s178
          %s180 = smul.addr %s176, 128
          %s181 = scalar_lea.hbm %s1, %s180
          %s182 = sshll.u32 %s175, 4
          %s183 = int_to_ptr.vmem [resolvable:$true] %s182
          %188 = dma.hbm_to_vmem [thread:$0]  %s181, 1024, %s183, %s172, 128, 128, 8
        $region28: #{tpu_custom_call.1} parent=19 // pred_fallthru
          _
      $region20: #{tpu_custom_call.1} parent=5 // pred_fallthru
        _
      %p189 = scmp.le.s32.totalorder 1, %s18
      %p190 = scmp.lt.s32.totalorder %s18, 5
      %p191 = pnand %p189, %p190
      %p192 = pneg %p191
      // Predicated region
      $region29: #{tpu_custom_call.1} parent=5 // pred_check
        _
      $region30: #{tpu_custom_call.1} parent=5 // pred_check_branch
        %194 = sbr.rel (%p191) target = $region32
      $region31: #{tpu_custom_call.1} parent=5 // pred_region
        %s195 = ssub.s32 %s18, 1
        %s196 = sand.u32 %s31, 1
        %s197 = scalar_lea.sflag [#allocation3], %s196
        %s198 = sand.u32 %s31, 1
        %s199 = smul.addr %s198, 64
        %s200 = scalar_lea.vmem [#allocation2], %s199
        // Predicated region
        $region33: #{tpu_custom_call.1} parent=31 // pred_check
          %p201 = pneg %p44
        $region34: #{tpu_custom_call.1} parent=31 // pred_check_branch
          %203 = sbr.rel (%p201) target = $region36
        $region35: #{tpu_custom_call.1} parent=31 // pred_region
          %204 = dma.done %s197, 1024
        $region36: #{tpu_custom_call.1} parent=31 // pred_fallthru
          _
        %s205 = sand.u32 %s23, 1
        %s206 = scalar_lea.sflag [#allocation6], %s205
        %s207 = sand.u32 %s57, 1
        %s208 = smul.addr %s207, 64
        %s209 = scalar_lea.vmem [#allocation5], %s208
        // Predicated region
        $region37: #{tpu_custom_call.1} parent=31 // pred_check
          %p210 = pneg %p70
        $region38: #{tpu_custom_call.1} parent=31 // pred_check_branch
          %212 = sbr.rel (%p210) target = $region40
        $region39: #{tpu_custom_call.1} parent=31 // pred_region
          %213 = dma.done %s206, 1024
        $region40: #{tpu_custom_call.1} parent=31 // pred_fallthru
          _
        // Predicated region
        $region41: #{tpu_custom_call.1} parent=31 // pred_check
          %p214 = pneg %p91
        $region42: #{tpu_custom_call.1} parent=31 // pred_check_branch
          %216 = sbr.rel (%p214) target = $region44
        $region43: #{tpu_custom_call.1} parent=31 // pred_region
          %217 = dma.done [#allocation6], 128
        $region44: #{tpu_custom_call.1} parent=31 // pred_fallthru
          _
        %s218 = sand.u32 %s31, 1
        %s219 = scalar_lea.sflag [#allocation3], %s218
        %s220 = sand.u32 %s31, 1
        %s221 = smul.addr %s220, 64
        %s222 = scalar_lea.vmem [#allocation2], %s221
        %p223 = pneg %p44
        %p224 = pneg %p41
        %s225 = sand.u32 %s23, 1
        %s226 = scalar_lea.sflag [#allocation6], %s225
        %s227 = sand.u32 %s57, 1
        %s228 = smul.addr %s227, 64
        %s229 = scalar_lea.vmem [#allocation5], %s228
        %p230 = pneg %p70
        %p231 = pneg %p67
        %p232 = pneg %p91
        %p233 = pneg %p88
        %p234 = pneg %p117
        %p235 = pneg %p114
        %s236 = sand.u32 %s104, 1
        %s237 = scalar_lea.sflag [#allocation4], %s236
        %s238 = sand.u32 %s104, 1
        %s239 = smul.addr %s238, 8
        %s240 = scalar_lea.vmem [#allocation8], %s239
        %s241 = smul.u32 8, %s23
        %s242 = smul.u32 8, %s23
        %v243 = vld [vmem:[%s200] sm:$0xff]
        %v244 = vld [vmem:[%s200 + $0x8] sm:$0xff]
        %v245 = vld [vmem:[%s200 + $0x10] sm:$0xff]
        %v246 = vld [vmem:[%s200 + $0x18] sm:$0xff]
        %v247 = vld [vmem:[%s200 + $0x20] sm:$0xff]
        %v248 = vld [vmem:[%s200 + $0x28] sm:$0xff]
        %v249 = vld [vmem:[%s200 + $0x30] sm:$0xff]
        %v250 = vld [vmem:[%s200 + $0x38] sm:$0xff]
        %v251 = vld [vmem:[%s209] sm:$0xff]
        %v252 = vld [vmem:[%s209 + $0x8] sm:$0xff]
        %v253 = vld [vmem:[%s209 + $0x10] sm:$0xff]
        %v254 = vld [vmem:[%s209 + $0x18] sm:$0xff]
        %v255 = vld [vmem:[%s209 + $0x20] sm:$0xff]
        %v256 = vld [vmem:[%s209 + $0x28] sm:$0xff]
        %v257 = vld [vmem:[%s209 + $0x30] sm:$0xff]
        %v258 = vld [vmem:[%s209 + $0x38] sm:$0xff]
        %v259 = vsub.f32 %v251, %v243
        %v260 = vsub.f32 %v252, %v244
        %v261 = vsub.f32 %v253, %v245
        %v262 = vsub.f32 %v254, %v246
        %v263 = vsub.f32 %v255, %v247
        %v264 = vsub.f32 %v256, %v248
        %v265 = vsub.f32 %v257, %v249
        %v266 = vsub.f32 %v258, %v250
        %v267 = vadd.f32 %v243, 0.0019634955
        %v268 = vadd.f32 %v244, 0.0019634955
        %v269 = vadd.f32 %v245, 0.0019634955
        %v270 = vadd.f32 %v246, 0.0019634955
        %v271 = vadd.f32 %v247, 0.0019634955
        %v272 = vadd.f32 %v248, 0.0019634955
        %v273 = vadd.f32 %v249, 0.0019634955
        %v274 = vadd.f32 %v250, 0.0019634955
        %v275 = vmul.f32 %v267, %v267
        %v276 = vmul.f32 %v268, %v268
        %v277 = vmul.f32 %v269, %v269
        %v278 = vmul.f32 %v270, %v270
        %v279 = vmul.f32 %v271, %v271
        %v280 = vmul.f32 %v272, %v272
        %v281 = vmul.f32 %v273, %v273
        %v282 = vmul.f32 %v274, %v274
        %v283 = vadd.f32 %v251, 0.0019634955
        %v284 = vadd.f32 %v252, 0.0019634955
        %v285 = vadd.f32 %v253, 0.0019634955
        %v286 = vadd.f32 %v254, 0.0019634955
        %v287 = vadd.f32 %v255, 0.0019634955
        %v288 = vadd.f32 %v256, 0.0019634955
        %v289 = vadd.f32 %v257, 0.0019634955
        %v290 = vadd.f32 %v258, 0.0019634955
        %v291 = vmul.f32 %v275, %v283
        %v292 = vmul.f32 %v276, %v284
        %v293 = vmul.f32 %v277, %v285
        %v294 = vmul.f32 %v278, %v286
        %v295 = vmul.f32 %v279, %v287
        %v296 = vmul.f32 %v280, %v288
        %v297 = vmul.f32 %v281, %v289
        %v298 = vmul.f32 %v282, %v290
        %v299 = vmul.f32 %v259, %v259
        %v300 = vmul.f32 %v260, %v260
        %v301 = vmul.f32 %v261, %v261
        %v302 = vmul.f32 %v262, %v262
        %v303 = vmul.f32 %v263, %v263
        %v304 = vmul.f32 %v264, %v264
        %v305 = vmul.f32 %v265, %v265
        %v306 = vmul.f32 %v266, %v266
        %v307 = vrcp.pop %v291
        %v308 = vmul.f32 %v299, %v307
        %v309 = vrcp.pop %v292
        %v310 = vmul.f32 %v300, %v309
        %v311 = vrcp.pop %v293
        %v312 = vmul.f32 %v301, %v311
        %v313 = vrcp.pop %v294
        %v314 = vmul.f32 %v302, %v313
        %v315 = vrcp.pop %v295
        %v316 = vmul.f32 %v303, %v315
        %v317 = vrcp.pop %v296
        %v318 = vmul.f32 %v304, %v317
        %v319 = vrcp.pop %v297
        %v320 = vmul.f32 %v305, %v319
        %v321 = vrcp.pop %v298
        %v322 = vmul.f32 %v306, %v321
        %v323 = vadd.f32 %v308, %v310
        %v324 = vadd.f32 %v323, %v312
        %v325 = vadd.f32 %v324, %v314
        %v326 = vadd.f32 %v325, %v316
        %v327 = vadd.f32 %v326, %v318
        %v328 = vadd.f32 %v327, %v320
        %v329 = vadd.f32 %v328, %v322
        %v330 = vadd.f32 %v329, 0.0
        %v331 = vld [vmem:[#allocation7] sm:$0xff]
        %v332 = vmul.f32 %v330, %v331
        %v333 = vadd.f32 %v332, 0.0
        %334 = vst [vmem:[%s240] sm:$0xff] %v333
        %s335 = sand.u32 %s104, 1
        %s336 = scalar_lea.sflag [#allocation4], %s335
        %s337 = sand.u32 %s104, 1
        %s338 = smul.addr %s337, 8
        %s339 = scalar_lea.vmem [#allocation8], %s338
        // Predicated region
        $region45: #{tpu_custom_call.1} parent=31 // pred_check
          %p340 = pneg %p114
        $region46: #{tpu_custom_call.1} parent=31 // pred_check_branch
          %342 = sbr.rel (%p340) target = $region48
        $region47: #{tpu_custom_call.1} parent=31 // pred_region
          %s344 = ssub.s32 128, 128
          %345 = vsyncadd %s336, %s344
          %s346 = smul.addr %s23, 128
          %s347 = scalar_lea.hbm %s3, %s346
          %s349 = sshll.u32 %s339, 4
          %s350 = int_to_ptr.vmem [resolvable:$true] %s349
          %352 = dma.vmem_to_hbm [thread:$0]  %s350, 128, %s347, %s336
        $region48: #{tpu_custom_call.1} parent=31 // pred_fallthru
          _
      $region32: #{tpu_custom_call.1} parent=5 // pred_fallthru
        _
      %p353 = scmp.le.s32.totalorder 2, %s18
      // Predicated region
      $region49: #{tpu_custom_call.1} parent=5 // pred_check
        %p354 = pneg %p353
      $region50: #{tpu_custom_call.1} parent=5 // pred_check_branch
        %356 = sbr.rel (%p354) target = $region52
      $region51: #{tpu_custom_call.1} parent=5 // pred_region
        %s357 = ssub.s32 %s18, 2
        // Predicated region
        $region53: #{tpu_custom_call.1} parent=51 // pred_check
          %p358 = pneg %p120
        $region54: #{tpu_custom_call.1} parent=51 // pred_check_branch
          %360 = sbr.rel (%p358) target = $region56
        $region55: #{tpu_custom_call.1} parent=51 // pred_region
          %s361 = sand.u32 %s105, 1
          %s362 = scalar_lea.sflag [#allocation4], %s361
          %s363 = sand.u32 %s105, 1
          %s364 = smul.addr %s363, 8
          %s365 = scalar_lea.vmem [#allocation8], %s364
          %366 = dma.done %s362, 128
        $region56: #{tpu_custom_call.1} parent=51 // pred_fallthru
          _
      $region52: #{tpu_custom_call.1} parent=5 // pred_fallthru
        _
    $region6: #{tpu_custom_call.1} parent=1 // loop_footer
      %s22 = sadd.s32 1, %s18
    $region7: #{tpu_custom_call.1} parent=1 // loop_footer_branch
      %17 = sbr.rel target = $region3
    $region8: #{tpu_custom_call.1} parent=1 // loop_exit
      _
    %367 = vsyncpa [#allocation3], 1
    %s368 = scalar_lea.sflag [#allocation3], 1
    %369 = vsyncpa %s368, 1
    %370 = vsyncpa [#allocation6], 1
    %s371 = scalar_lea.sflag [#allocation6], 1
    %372 = vsyncpa %s371, 1
    %373 = vsyncpa [#allocation4], 1
    %s374 = scalar_lea.sflag [#allocation4], 1
    %375 = vsyncpa %s374, 1

</llo_original>
